<compile_context>
chip_gen: v6e
topology: v6e:2x2x1
jax: 0.10.0
libtpu: 0.0.40
codegen_flags: <defaults>
</compile_context>

<pallas_src>
import functools

import jax
import jax.numpy as jnp
from jax.experimental import pallas as pl
from jax.experimental.pallas import tpu as pltpu


def _equivariant_block_kernel(n, x_ref, wphi_ref, bphi_ref,
                              w1a_ref, w1b_ref, b1_ref,
                              w2_ref, b2_ref, o_ref):
    """One batch tile.

    x_ref : (tb*n, C)   one-hot rows (n consecutive rows per batch element)
    o_ref : (tb*n, d)   psi output rows
    """
    rows, _ = x_ref.shape
    d = o_ref.shape[-1]
    tb = rows // n

    x = x_ref[...]  # (tb*n, C) float32

    # phi: per-position Linear(C -> d)
    phi = jnp.dot(x, wphi_ref[...],
                  preferred_element_type=jnp.float32) + bphi_ref[...]      # (tb*n, d)

    # u = sum over the n positions of each batch element (sublane reduction),
    # then broadcast back to every position of that batch element.
    u = jnp.sum(phi.reshape(tb, n, d), axis=1, keepdims=True)              # (tb, 1, d)
    u_rep = jnp.broadcast_to(u, (tb, n, d)).reshape(rows, d)               # (tb*n, d)

    # psi layer 1 on concat([phi, u_rep], -1), fused as two matmuls.
    h = (jnp.dot(phi, w1a_ref[...], preferred_element_type=jnp.float32)
         + jnp.dot(u_rep, w1b_ref[...], preferred_element_type=jnp.float32)
         + b1_ref[...])
    h = jnp.maximum(h, 0.0)

    # psi layer 2
    h = jnp.dot(h, w2_ref[...], preferred_element_type=jnp.float32) + b2_ref[...]

    o_ref[...] = h.astype(o_ref.dtype)


def equivariant_block_forward(x_onehot, params, *, block_batch=128):
    """Pallas implementation of EquivariantBlock.forward.

    x_onehot: float32 (B, n, C)
    params:   dict with
              w_phi  (C, d),   b_phi  (d,)
              w_psi1 (2d, d),  b_psi1 (d,)
              w_psi2 (d, d),   b_psi2 (d,)
    returns:  float32 (B, n, d)
    """
    B, n, C = x_onehot.shape
    w_phi, b_phi = params["w_phi"], params["b_phi"]
    w_psi1, b_psi1 = params["w_psi1"], params["b_psi1"]
    w_psi2, b_psi2 = params["w_psi2"], params["b_psi2"]
    d = w_phi.shape[1]

    # Split psi's first layer so concat([phi, u]) never has to be built.
    w1a, w1b = w_psi1[:d], w_psi1[d:]

    # Batch tile size: big enough to feed the MXU / amortize per-step overhead
    # at large B, clamped to B (no padding waste) at small B.
    tb = min(block_batch, B)
    Bp = pl.cdiv(B, tb) * tb
    if Bp != B:
        x_onehot = jnp.pad(x_onehot, ((0, Bp - B), (0, 0), (0, 0)))

    x2 = x_onehot.reshape(Bp * n, C).astype(jnp.float32)
    rows = tb * n
    grid = (Bp // tb,)

    full_block = lambda i: (0, 0)

    out2 = pl.pallas_call(
        functools.partial(_equivariant_block_kernel, n),
        out_shape=jax.ShapeDtypeStruct((Bp * n, d), jnp.float32),
        grid_spec=pltpu.PrefetchScalarGridSpec(
            num_scalar_prefetch=0,
            grid=grid,
            in_specs=[
                # Tiled input rows: pipelined across the batch grid axis.
                pl.BlockSpec((rows, C), lambda i: (i, 0)),
                # Weights / biases: full blocks, resident in VMEM for all tiles.
                pl.BlockSpec((C, d), full_block),
                pl.BlockSpec((1, d), full_block),
                pl.BlockSpec((d, d), full_block),
                pl.BlockSpec((d, d), full_block),
                pl.BlockSpec((1, d), full_block),
                pl.BlockSpec((d, d), full_block),
                pl.BlockSpec((1, d), full_block),
            ],
            out_specs=pl.BlockSpec((rows, d), lambda i: (i, 0)),
        ),
        compiler_params=pltpu.CompilerParams(
            dimension_semantics=("parallel",)),  # megacore sharding on v7x
    )(x2, w_phi, b_phi.reshape(1, d),
      w1a, w1b, b_psi1.reshape(1, d),
      w_psi2, b_psi2.reshape(1, d))

    return out2.reshape(Bp, n, d)[:B]


def init_params(key, num_classes, d):
    """Deterministic init matching torch nn.Linear defaults (weights stored (in, out))."""
    def linear(k, fan_in, fan_out):
        kw, kb = jax.random.split(k)
        bound = fan_in ** -0.5
        w = jax.random.uniform(kw, (fan_in, fan_out), jnp.float32, -bound, bound)
        b = jax.random.uniform(kb, (fan_out,), jnp.float32, -bound, bound)
        return w, b

    k1, k2, k3 = jax.random.split(key, 3)
    w_phi, b_phi = linear(k1, num_classes, d)
    w_psi1, b_psi1 = linear(k2, 2 * d, d)
    w_psi2, b_psi2 = linear(k3, d, d)
    return dict(w_phi=w_phi, b_phi=b_phi,
                w_psi1=w_psi1, b_psi1=b_psi1,
                w_psi2=w_psi2, b_psi2=b_psi2)


if __name__ == "__main__":
    # Small shapes consistent with the module: batch=2, seq(n)=8, classes=10, d=32.
    B, n, C, d = 2, 8, 10, 32

    key = jax.random.PRNGKey(0)
    key, kx = jax.random.split(key)
    x_idx = jax.random.randint(kx, (B, n), 0, C, jnp.int32)
    x_onehot = jax.nn.one_hot(x_idx, C, dtype=jnp.float32)   # module takes one-hot input

    params = init_params(key, C, d)

    out = equivariant_block_forward(x_onehot, params)
    jax.block_until_ready(out)

    # Pure-JAX reference of EquivariantBlock.forward (high-precision matmuls).
    hi = jax.lax.Precision.HIGHEST
    phi = jnp.einsum("bnc,cd->bnd", x_onehot, params["w_phi"],
                     precision=hi) + params["b_phi"]
    u = phi.sum(axis=1, keepdims=True)
    u_rep = jnp.broadcast_to(u, phi.shape)
    concat = jnp.concatenate([phi, u_rep], axis=-1)
    h = jnp.einsum("bnk,kd->bnd", concat, params["w_psi1"],
                   precision=hi) + params["b_psi1"]
    h = jnp.maximum(h, 0.0)
    ref = jnp.einsum("bnd,de->bne", h, params["w_psi2"],
                     precision=hi) + params["b_psi2"]

    assert out.shape == (B, n, d), out.shape
    assert jnp.allclose(out, ref, atol=1e-4, rtol=1e-4), float(jnp.max(jnp.abs(out - ref)))

    print("KERNEL_OK")
</pallas_src>

<mosaic_0001>
module attributes {stable_mosaic.version = 11 : i64} {
  func.func @_equivariant_block_kernel(%arg0: i32, %arg1: memref<16x10xf32, #tpu.memory_space<vmem>>, %arg2: memref<10x32xf32, #tpu.memory_space<vmem>>, %arg3: memref<1x32xf32, #tpu.memory_space<vmem>>, %arg4: memref<32x32xf32, #tpu.memory_space<vmem>>, %arg5: memref<32x32xf32, #tpu.memory_space<vmem>>, %arg6: memref<1x32xf32, #tpu.memory_space<vmem>>, %arg7: memref<32x32xf32, #tpu.memory_space<vmem>>, %arg8: memref<1x32xf32, #tpu.memory_space<vmem>>, %arg9: memref<16x32xf32, #tpu.memory_space<vmem>>) attributes {dimension_semantics = [#tpu.dimension_semantics<parallel>], iteration_bounds = array<i64: 1>, scalar_prefetch = 0 : i64, scratch_operands = 0 : i64, tpu.core_type = #tpu.core_type<tc>, window_params = [{transform_indices = @transform_0, window_bounds = array<i64: 16, 10>}, {pipeline_mode = #tpu.pipeline_mode<synchronous>, transform_indices = @transform_1, window_bounds = array<i64: 10, 32>}, {pipeline_mode = #tpu.pipeline_mode<synchronous>, transform_indices = @transform_2, window_bounds = array<i64: 1, 32>}, {pipeline_mode = #tpu.pipeline_mode<synchronous>, transform_indices = @transform_3, window_bounds = array<i64: 32, 32>}, {pipeline_mode = #tpu.pipeline_mode<synchronous>, transform_indices = @transform_4, window_bounds = array<i64: 32, 32>}, {pipeline_mode = #tpu.pipeline_mode<synchronous>, transform_indices = @transform_5, window_bounds = array<i64: 1, 32>}, {pipeline_mode = #tpu.pipeline_mode<synchronous>, transform_indices = @transform_6, window_bounds = array<i64: 32, 32>}, {pipeline_mode = #tpu.pipeline_mode<synchronous>, transform_indices = @transform_7, window_bounds = array<i64: 1, 32>}, {transform_indices = @transform_8, window_bounds = array<i64: 16, 32>}]} {
    %c0 = arith.constant 0 : index
    %c0_0 = arith.constant 0 : index
    %0 = vector.load %arg1[%c0, %c0_0] : memref<16x10xf32, #tpu.memory_space<vmem>>, vector<16x10xf32>
    %c0_1 = arith.constant 0 : index
    %c0_2 = arith.constant 0 : index
    %1 = vector.load %arg2[%c0_1, %c0_2] : memref<10x32xf32, #tpu.memory_space<vmem>>, vector<10x32xf32>
    %cst = arith.constant dense<0.000000e+00> : vector<16x32xf32>
    %2 = tpu.matmul %0, %1, %cst {dimension_numbers = #tpu.dot_dimension_numbers<[1], [0], [0], [1], [0, 0, 1, 1], [], []>} : vector<16x10xf32>, vector<10x32xf32>, vector<16x32xf32> -> vector<16x32xf32>
    %c0_3 = arith.constant 0 : index
    %c0_4 = arith.constant 0 : index
    %3 = vector.load %arg3[%c0_3, %c0_4] : memref<1x32xf32, #tpu.memory_space<vmem>>, vector<1x32xf32>
    %4 = vector.broadcast %3 : vector<1x32xf32> to vector<16x32xf32>
    %5 = arith.addf %2, %4 : vector<16x32xf32>
    %6 = vector.shape_cast %5 : vector<16x32xf32> to vector<2x8x32xf32>
    %cst_5 = arith.constant dense<0.000000e+00> : vector<2x32xf32>
    %7 = vector.multi_reduction <add>, %6, %cst_5 [1] : vector<2x8x32xf32> to vector<2x32xf32>
    %8 = vector.shape_cast %7 : vector<2x32xf32> to vector<2x1x32xf32>
    %9 = vector.shape_cast %8 : vector<2x1x32xf32> to vector<2x1x32xf32>
    %10 = vector.broadcast %9 : vector<2x1x32xf32> to vector<2x8x32xf32>
    %11 = vector.shape_cast %10 : vector<2x8x32xf32> to vector<16x32xf32>
    %c0_6 = arith.constant 0 : index
    %c0_7 = arith.constant 0 : index
    %12 = vector.load %arg4[%c0_6, %c0_7] : memref<32x32xf32, #tpu.memory_space<vmem>>, vector<32x32xf32>
    %cst_8 = arith.constant dense<0.000000e+00> : vector<16x32xf32>
    %13 = tpu.matmul %5, %12, %cst_8 {dimension_numbers = #tpu.dot_dimension_numbers<[1], [0], [0], [1], [0, 0, 1, 1], [], []>} : vector<16x32xf32>, vector<32x32xf32>, vector<16x32xf32> -> vector<16x32xf32>
    %c0_9 = arith.constant 0 : index
    %c0_10 = arith.constant 0 : index
    %14 = vector.load %arg5[%c0_9, %c0_10] : memref<32x32xf32, #tpu.memory_space<vmem>>, vector<32x32xf32>
    %cst_11 = arith.constant dense<0.000000e+00> : vector<16x32xf32>
    %15 = tpu.matmul %11, %14, %cst_11 {dimension_numbers = #tpu.dot_dimension_numbers<[1], [0], [0], [1], [0, 0, 1, 1], [], []>} : vector<16x32xf32>, vector<32x32xf32>, vector<16x32xf32> -> vector<16x32xf32>
    %16 = arith.addf %13, %15 : vector<16x32xf32>
    %c0_12 = arith.constant 0 : index
    %c0_13 = arith.constant 0 : index
    %17 = vector.load %arg6[%c0_12, %c0_13] : memref<1x32xf32, #tpu.memory_space<vmem>>, vector<1x32xf32>
    %18 = vector.broadcast %17 : vector<1x32xf32> to vector<16x32xf32>
    %19 = arith.addf %16, %18 : vector<16x32xf32>
    %cst_14 = arith.constant 0.000000e+00 : f32
    %20 = vector.broadcast %cst_14 : f32 to vector<16x32xf32>
    %21 = arith.maximumf %19, %20 : vector<16x32xf32>
    %c0_15 = arith.constant 0 : index
    %c0_16 = arith.constant 0 : index
    %22 = vector.load %arg7[%c0_15, %c0_16] : memref<32x32xf32, #tpu.memory_space<vmem>>, vector<32x32xf32>
    %cst_17 = arith.constant dense<0.000000e+00> : vector<16x32xf32>
    %23 = tpu.matmul %21, %22, %cst_17 {dimension_numbers = #tpu.dot_dimension_numbers<[1], [0], [0], [1], [0, 0, 1, 1], [], []>} : vector<16x32xf32>, vector<32x32xf32>, vector<16x32xf32> -> vector<16x32xf32>
    %c0_18 = arith.constant 0 : index
    %c0_19 = arith.constant 0 : index
    %24 = vector.load %arg8[%c0_18, %c0_19] : memref<1x32xf32, #tpu.memory_space<vmem>>, vector<1x32xf32>
    %25 = vector.broadcast %24 : vector<1x32xf32> to vector<16x32xf32>
    %26 = arith.addf %23, %25 : vector<16x32xf32>
    %c0_20 = arith.constant 0 : index
    %c0_21 = arith.constant 0 : index
    %27 = vector.load %arg9[%c0_20, %c0_21] : memref<16x32xf32, #tpu.memory_space<vmem>>, vector<16x32xf32>
    tpu.vector_store %arg9[%c0_20, %c0_21], %26 {strides = array<i32>} : memref<16x32xf32, #tpu.memory_space<vmem>>, vector<16x32xf32>,
    return
  }
  func.func @transform_0(%arg0: i32) -> (i32, i32) {
    %c0_i32 = arith.constant 0 : i32
    %c0_i32_0 = arith.constant 0 : i32
    return %arg0, %c0_i32 : i32, i32
  }
  func.func @transform_1(%arg0: i32) -> (i32, i32) {
    %c0_i32 = arith.constant 0 : i32
    %c0_i32_0 = arith.constant 0 : i32
    %c0_i32_1 = arith.constant 0 : i32
    return %c0_i32, %c0_i32_0 : i32, i32
  }
  func.func @transform_2(%arg0: i32) -> (i32, i32) {
    %c0_i32 = arith.constant 0 : i32
    %c0_i32_0 = arith.constant 0 : i32
    %c0_i32_1 = arith.constant 0 : i32
    return %c0_i32, %c0_i32_0 : i32, i32
  }
  func.func @transform_3(%arg0: i32) -> (i32, i32) {
    %c0_i32 = arith.constant 0 : i32
    %c0_i32_0 = arith.constant 0 : i32
    %c0_i32_1 = arith.constant 0 : i32
    return %c0_i32, %c0_i32_0 : i32, i32
  }
  func.func @transform_4(%arg0: i32) -> (i32, i32) {
    %c0_i32 = arith.constant 0 : i32
    %c0_i32_0 = arith.constant 0 : i32
    %c0_i32_1 = arith.constant 0 : i32
    return %c0_i32, %c0_i32_0 : i32, i32
  }
  func.func @transform_5(%arg0: i32) -> (i32, i32) {
    %c0_i32 = arith.constant 0 : i32
    %c0_i32_0 = arith.constant 0 : i32
    %c0_i32_1 = arith.constant 0 : i32
    return %c0_i32, %c0_i32_0 : i32, i32
  }
  func.func @transform_6(%arg0: i32) -> (i32, i32) {
    %c0_i32 = arith.constant 0 : i32
    %c0_i32_0 = arith.constant 0 : i32
    %c0_i32_1 = arith.constant 0 : i32
    return %c0_i32, %c0_i32_0 : i32, i32
  }
  func.func @transform_7(%arg0: i32) -> (i32, i32) {
    %c0_i32 = arith.constant 0 : i32
    %c0_i32_0 = arith.constant 0 : i32
    %c0_i32_1 = arith.constant 0 : i32
    return %c0_i32, %c0_i32_0 : i32, i32
  }
  func.func @transform_8(%arg0: i32) -> (i32, i32) {
    %c0_i32 = arith.constant 0 : i32
    %c0_i32_0 = arith.constant 0 : i32
    return %arg0, %c0_i32 : i32, i32
  }
}

</mosaic_0001>

<llo_original>
// kernel: tpu_custom_call.1
$region0: #{tpu_custom_call.1}
  #allocation0 [shape = 'u32[]', space=smem, size = 0x4, offset = 0x4, fixed_abs, tag = 'smem constant byte address 0x4 - core index']
  #allocation1 [shape = 'u32[144,128]{1,0:T(1,128)}', space=vmem, size = 0x12000, scoped, tag = 'internal scratch']
  %s0 = inlined_call_operand.hbm [shape: f32[16,10], index: 0, kind: input, shape index: {}]
  %s1 = inlined_call_operand.hbm [shape: f32[10,32], index: 1, kind: input, shape index: {}]
  %s2 = inlined_call_operand.vmem [shape: f32[1,32], index: 2, kind: input, shape index: {}]
  %s3 = inlined_call_operand.hbm [shape: f32[32,32], index: 3, kind: input, shape index: {}]
  %s4 = inlined_call_operand.hbm [shape: f32[32,32], index: 4, kind: input, shape index: {}]
  %s5 = inlined_call_operand.vmem [shape: f32[1,32], index: 5, kind: input, shape index: {}]
  %s6 = inlined_call_operand.hbm [shape: f32[32,32], index: 6, kind: input, shape index: {}]
  %s7 = inlined_call_operand.vmem [shape: f32[1,32], index: 7, kind: input, shape index: {}]
  %s8 = inlined_call_operand.hbm [shape: f32[16,32], index: 8, kind: output, shape index: {}]
  %s9 = sld [smem:[#allocation0]]
  $region62: #{tpu_custom_call.1} parent=0
    _
  %s11 = ssub.s32 1, %s9
  %s12 = scalar_select 0, %s11, %s9
  $region1: #{tpu_custom_call.1} parent=0
    #allocation2 [shape = 'u8[8192]{0}', space=vmem, size = 0x2000, scoped, tag = 'input window, operand 0, single buffered']
    #allocation3 [shape = 's32[1]{0}', space=sflag, size = 0x4, scoped, tag = 'scoped memory for tpu_custom_call.1']
    #allocation4 [shape = 's32[1]{0}', space=sflag, size = 0x4, scoped, tag = 'scoped memory for tpu_custom_call.1']
    #allocation5 [shape = 'u8[8192]{0}', space=vmem, size = 0x2000, scoped, tag = 'input window, operand 1, single buffered']
    #allocation6 [shape = 's32[1]{0}', space=sflag, size = 0x4, scoped, tag = 'scoped memory for tpu_custom_call.1']
    #allocation7 [shape = 'u8[16384]{0}', space=vmem, size = 0x4000, scoped, tag = 'input window, operand 3, single buffered']
    #allocation8 [shape = 'u8[16384]{0}', space=vmem, size = 0x4000, scoped, tag = 'input window, operand 4, single buffered']
    #allocation9 [shape = 's32[1]{0}', space=sflag, size = 0x4, scoped, tag = 'scoped memory for tpu_custom_call.1']
    #allocation10 [shape = 'u8[16384]{0}', space=vmem, size = 0x4000, scoped, tag = 'input window, operand 6, single buffered']
    #allocation11 [shape = 'u8[8192]{0}', space=vmem, size = 0x2000, scoped, tag = 'output window, operand 0, single buffered']
    %13 = vsyncpa [#allocation3], 0
    %14 = vsyncpa [#allocation6], 0
    %15 = vsyncpa [#allocation9], 0
    %16 = vsyncpa [#allocation4], 0
    // Predicated region
    $region2: #{tpu_custom_call.1} parent=1 // pred_check
      _
    $region3: #{tpu_custom_call.1} parent=1 // pred_check_branch
      %18 = sbr.rel (0) target = $region5
    $region4: #{tpu_custom_call.1} parent=1 // pred_region
      %s20 = ssub.s32 256, 256
      %21 = vsyncadd [#allocation3], %s20
      %s22 = sshll.u32 [#allocation2], 4
      %s23 = int_to_ptr.vmem [resolvable:$true] %s22
      %28 = dma.hbm_to_vmem [thread:$0]  %s0, 256, %s23, [#allocation3], 128, 128, 8
    $region5: #{tpu_custom_call.1} parent=1 // pred_fallthru
      _
    // Predicated region
    $region6: #{tpu_custom_call.1} parent=1 // pred_check
      _
    $region7: #{tpu_custom_call.1} parent=1 // pred_check_branch
      %30 = sbr.rel (0) target = $region9
    $region8: #{tpu_custom_call.1} parent=1 // pred_region
      %s32 = ssub.s32 256, 256
      %33 = vsyncadd [#allocation6], %s32
      %s34 = sshll.u32 [#allocation5], 4
      %s35 = int_to_ptr.vmem [resolvable:$true] %s34
      %40 = dma.hbm_to_vmem [thread:$0]  %s1, 256, %s35, [#allocation6], 128, 128, 8
    $region9: #{tpu_custom_call.1} parent=1 // pred_fallthru
      _
    // Predicated region
    $region10: #{tpu_custom_call.1} parent=1 // pred_check
      _
    $region11: #{tpu_custom_call.1} parent=1 // pred_check_branch
      %42 = sbr.rel (0) target = $region13
    $region12: #{tpu_custom_call.1} parent=1 // pred_region
      _
    $region13: #{tpu_custom_call.1} parent=1 // pred_fallthru
      _
    // Predicated region
    $region14: #{tpu_custom_call.1} parent=1 // pred_check
      _
    $region15: #{tpu_custom_call.1} parent=1 // pred_check_branch
      %44 = sbr.rel (0) target = $region17
    $region16: #{tpu_custom_call.1} parent=1 // pred_region
      %s46 = ssub.s32 512, 512
      %47 = vsyncadd [#allocation6], %s46
      %s48 = sshll.u32 [#allocation7], 4
      %s49 = int_to_ptr.vmem [resolvable:$true] %s48
      %54 = dma.hbm_to_vmem [thread:$0]  %s3, 512, %s49, [#allocation6], 128, 128, 8
    $region17: #{tpu_custom_call.1} parent=1 // pred_fallthru
      _
    // Predicated region
    $region18: #{tpu_custom_call.1} parent=1 // pred_check
      _
    $region19: #{tpu_custom_call.1} parent=1 // pred_check_branch
      %56 = sbr.rel (0) target = $region21
    $region20: #{tpu_custom_call.1} parent=1 // pred_region
      %s58 = ssub.s32 512, 512
      %59 = vsyncadd [#allocation9], %s58
      %s60 = sshll.u32 [#allocation8], 4
      %s61 = int_to_ptr.vmem [resolvable:$true] %s60
      %66 = dma.hbm_to_vmem [thread:$0]  %s4, 512, %s61, [#allocation9], 128, 128, 8
    $region21: #{tpu_custom_call.1} parent=1 // pred_fallthru
      _
    // Predicated region
    $region22: #{tpu_custom_call.1} parent=1 // pred_check
      _
    $region23: #{tpu_custom_call.1} parent=1 // pred_check_branch
      %68 = sbr.rel (0) target = $region25
    $region24: #{tpu_custom_call.1} parent=1 // pred_region
      _
    $region25: #{tpu_custom_call.1} parent=1 // pred_fallthru
      _
    // Predicated region
    $region26: #{tpu_custom_call.1} parent=1 // pred_check
      _
    $region27: #{tpu_custom_call.1} parent=1 // pred_check_branch
      %70 = sbr.rel (0) target = $region29
    $region28: #{tpu_custom_call.1} parent=1 // pred_region
      %s72 = ssub.s32 512, 512
      %73 = vsyncadd [#allocation9], %s72
      %s74 = sshll.u32 [#allocation10], 4
      %s75 = int_to_ptr.vmem [resolvable:$true] %s74
      %80 = dma.hbm_to_vmem [thread:$0]  %s6, 512, %s75, [#allocation9], 128, 128, 8
    $region29: #{tpu_custom_call.1} parent=1 // pred_fallthru
      _
    // Predicated region
    $region30: #{tpu_custom_call.1} parent=1 // pred_check
      _
    $region31: #{tpu_custom_call.1} parent=1 // pred_check_branch
      %82 = sbr.rel (0) target = $region33
    $region32: #{tpu_custom_call.1} parent=1 // pred_region
      _
    $region33: #{tpu_custom_call.1} parent=1 // pred_fallthru
      _
    // Predicated region
    $region34: #{tpu_custom_call.1} parent=1 // pred_check
      _
    $region35: #{tpu_custom_call.1} parent=1 // pred_check_branch
      %84 = sbr.rel (0) target = $region37
    $region36: #{tpu_custom_call.1} parent=1 // pred_region
      %85 = dma.done [#allocation3], 256
    $region37: #{tpu_custom_call.1} parent=1 // pred_fallthru
      _
    // Predicated region
    $region38: #{tpu_custom_call.1} parent=1 // pred_check
      _
    $region39: #{tpu_custom_call.1} parent=1 // pred_check_branch
      %87 = sbr.rel (0) target = $region41
    $region40: #{tpu_custom_call.1} parent=1 // pred_region
      %88 = dma.done [#allocation6], 256
    $region41: #{tpu_custom_call.1} parent=1 // pred_fallthru
      _
    // Predicated region
    $region42: #{tpu_custom_call.1} parent=1 // pred_check
      _
    $region43: #{tpu_custom_call.1} parent=1 // pred_check_branch
      %90 = sbr.rel (0) target = $region45
    $region44: #{tpu_custom_call.1} parent=1 // pred_region
      %91 = dma.done [#allocation6], 512
    $region45: #{tpu_custom_call.1} parent=1 // pred_fallthru
      _
    // Predicated region
    $region46: #{tpu_custom_call.1} parent=1 // pred_check
      _
    $region47: #{tpu_custom_call.1} parent=1 // pred_check_branch
      %93 = sbr.rel (0) target = $region49
    $region48: #{tpu_custom_call.1} parent=1 // pred_region
      %94 = dma.done [#allocation9], 512
    $region49: #{tpu_custom_call.1} parent=1 // pred_fallthru
      _
    // Predicated region
    $region50: #{tpu_custom_call.1} parent=1 // pred_check
      _
    $region51: #{tpu_custom_call.1} parent=1 // pred_check_branch
      %96 = sbr.rel (0) target = $region53
    $region52: #{tpu_custom_call.1} parent=1 // pred_region
      %97 = dma.done [#allocation9], 512
    $region53: #{tpu_custom_call.1} parent=1 // pred_fallthru
      _
    %v98 = vld [vmem:[#allocation2] sm:$0xff]
    %v99 = vld [vmem:[#allocation2 + $0x8] sm:$0xff]
    %v100 = vld [vmem:[#allocation5] sm:$0xff]
    %v101 = vld [vmem:[#allocation5 + $0x8] sm:$0x3]
    %v102 = vld [vmem:[%s2] sm:$0x1]
    %v104 = vlaneseq
    %v105 = vshrl.u32 %v104, 7
    %v106 = vsub.s32 0, %v105
    %v107 = vrot.slane %v102, %v106
    %vm109 = vcmask 80896
    %v111 = vsel %vm109, %v98, 0
    %v114 = vsel %vm109, %v99, 0
    %vm116 = vcmask 1041408
    %v118 = vsel %vm116, %v101, 0
    %120 = vmatprep.subr.mxu0 0.0
    %121 = vmatpush1.msra.mxu0 0.0
    %122 = vmatprep.subr.mxu0 0.0
    %123 = vmatpush1.msra.mxu0 0.0
    %124 = vmatprep.subr.mxu0 0.0
    %125 = vmatpush1.msra.mxu0 0.0
    %126 = vmatprep.subr.mxu0 0.0
    %127 = vmatpush1.msra.mxu0 0.0
    %128 = vmatprep.subr.mxu0 0.0
    %129 = vmatpush1.msra.mxu0 0.0
    %130 = vmatprep.subr.mxu0 0.0
    %131 = vmatpush1.msra.mxu0 0.0
    %132 = vmatprep.subr.mxu0 0.0
    %133 = vmatpush1.msra.mxu0 0.0
    %134 = vmatprep.subr.mxu0 0.0
    %135 = vmatpush1.msra.mxu0 0.0
    %136 = vmatprep.subr.mxu0 0.0
    %137 = vmatpush1.msra.mxu0 0.0
    %138 = vmatprep.subr.mxu0 0.0
    %139 = vmatpush1.msra.mxu0 0.0
    %140 = vmatprep.subr.mxu0 0.0
    %141 = vmatpush1.msra.mxu0 0.0
    %142 = vmatprep.subr.mxu0 0.0
    %143 = vmatpush1.msra.mxu0 0.0
    %144 = vmatprep.subr.mxu0 0.0
    %145 = vmatpush1.msra.mxu0 0.0
    %146 = vmatprep.subr.mxu0 0.0
    %147 = vmatpush1.msra.mxu0 0.0
    %148 = vmatprep.subr.mxu0 0.0
    %149 = vmatpush1.msra.mxu0 %v118
    %150 = vmatprep.subr.mxu0 0.0
    %151 = vmatpush1.msra.mxu0 %v100
    %152 = vmatprep.subr.mxu0 0.0
    %153 = vmatpush2.msra.mxu0 0.0
    %154 = vmatprep.subr.mxu0 0.0
    %155 = vmatpush2.msra.mxu0 0.0
    %156 = vmatprep.subr.mxu0 0.0
    %157 = vmatpush2.msra.mxu0 0.0
    %158 = vmatprep.subr.mxu0 0.0
    %159 = vmatpush2.msra.mxu0 0.0
    %160 = vmatprep.subr.mxu0 0.0
    %161 = vmatpush2.msra.mxu0 0.0
    %162 = vmatprep.subr.mxu0 0.0
    %163 = vmatpush2.msra.mxu0 0.0
    %164 = vmatprep.subr.mxu0 0.0
    %165 = vmatpush2.msra.mxu0 0.0
    %166 = vmatprep.subr.mxu0 0.0
    %167 = vmatpush2.msra.mxu0 0.0
    %168 = vmatprep.subr.mxu0 0.0
    %169 = vmatpush2.msra.mxu0 0.0
    %170 = vmatprep.subr.mxu0 0.0
    %171 = vmatpush2.msra.mxu0 0.0
    %172 = vmatprep.subr.mxu0 0.0
    %173 = vmatpush2.msra.mxu0 0.0
    %174 = vmatprep.subr.mxu0 0.0
    %175 = vmatpush2.msra.mxu0 0.0
    %176 = vmatprep.subr.mxu0 0.0
    %177 = vmatpush2.msra.mxu0 0.0
    %178 = vmatprep.subr.mxu0 0.0
    %179 = vmatpush2.msra.mxu0 0.0
    %180 = vmatprep.subr.mxu0 0.0
    %181 = vmatpush2.msra.mxu0 0.0
    %182 = vmatprep.subr.mxu0 0.0
    %183 = vmatpush2.msra.mxu0 0.0
    %184 = vmatprep.mubr.f32.mxu0 0.0
    %185 = vmatmul.mubr.f32.gmra.mxu0 %v111
    %v186 = vpop.f32.mrf.mxu0
    %v187 = vadd.f32 %v107, %v186
    %v188 = vpop.f32.mrf.mxu0
    %189 = vmatprep.mubr.f32.mxu0 0.0
    %190 = vmatmul.mubr.f32.gmra.mxu0 %v114
    %v191 = vpop.f32.mrf.mxu0
    %v192 = vadd.f32 %v107, %v191
    %v193 = vpop.f32.mrf.mxu0
    %194 = vdwg.mxu0
    %vm195 = vcmask 261120
    %v196 = vsel %vm195, %v187, 0.0
    %v197 = vrot.slane %v196, 4
    %v198 = vadd.f32 %v196, %v197
    %v199 = vrot.slane %v198, 2
    %v200 = vadd.f32 %v198, %v199
    %v201 = vrot.slane %v200, 1
    %v202 = vadd.f32 %v200, %v201
    %v203 = vsel %vm195, %v192, 0.0
    %v204 = vrot.slane %v203, 4
    %v205 = vadd.f32 %v203, %v204
    %v206 = vrot.slane %v205, 2
    %v207 = vadd.f32 %v205, %v206
    %v208 = vrot.slane %v207, 1
    %v209 = vadd.f32 %v207, %v208
    %v210 = vld [vmem:[#allocation7] sm:$0xff]
    %v211 = vld [vmem:[#allocation7 + $0x8] sm:$0xff]
    %v212 = vld [vmem:[#allocation7 + $0x10] sm:$0xff]
    %v213 = vld [vmem:[#allocation7 + $0x18] sm:$0xff]
    %v214 = vld [vmem:[#allocation8] sm:$0xff]
    %v215 = vld [vmem:[#allocation8 + $0x8] sm:$0xff]
    %v216 = vld [vmem:[#allocation8 + $0x10] sm:$0xff]
    %v217 = vld [vmem:[#allocation8 + $0x18] sm:$0xff]
    %v219 = vsel %vm195, %v202, 0
    %v222 = vsel %vm195, %v209, 0
    %224 = vmatprep.subr.mxu0 0.0
    %225 = vmatpush1.msra.mxu0 0.0
    %226 = vmatprep.subr.mxu0 0.0
    %227 = vmatpush1.msra.mxu0 0.0
    %228 = vmatprep.subr.mxu0 0.0
    %229 = vmatpush1.msra.mxu0 0.0
    %230 = vmatprep.subr.mxu0 0.0
    %231 = vmatpush1.msra.mxu0 0.0
    %232 = vmatprep.subr.mxu0 0.0
    %233 = vmatpush1.msra.mxu0 0.0
    %234 = vmatprep.subr.mxu0 0.0
    %235 = vmatpush1.msra.mxu0 0.0
    %236 = vmatprep.subr.mxu0 0.0
    %237 = vmatpush1.msra.mxu0 0.0
    %238 = vmatprep.subr.mxu0 0.0
    %239 = vmatpush1.msra.mxu0 0.0
    %240 = vmatprep.subr.mxu0 0.0
    %241 = vmatpush1.msra.mxu0 0.0
    %242 = vmatprep.subr.mxu0 0.0
    %243 = vmatpush1.msra.mxu0 0.0
    %244 = vmatprep.subr.mxu0 0.0
    %245 = vmatpush1.msra.mxu0 0.0
    %246 = vmatprep.subr.mxu0 0.0
    %247 = vmatpush1.msra.mxu0 0.0
    %248 = vmatprep.subr.mxu0 0.0
    %249 = vmatpush1.msra.mxu0 %v217
    %250 = vmatprep.subr.mxu0 0.0
    %251 = vmatpush1.msra.mxu0 %v216
    %252 = vmatprep.subr.mxu0 0.0
    %253 = vmatpush1.msra.mxu0 %v215
    %254 = vmatprep.subr.mxu0 0.0
    %255 = vmatpush1.msra.mxu0 %v214
    %256 = vmatprep.subr.mxu0 0.0
    %257 = vmatpush2.msra.mxu0 0.0
    %258 = vmatprep.subr.mxu0 0.0
    %259 = vmatpush2.msra.mxu0 0.0
    %260 = vmatprep.subr.mxu0 0.0
    %261 = vmatpush2.msra.mxu0 0.0
    %262 = vmatprep.subr.mxu0 0.0
    %263 = vmatpush2.msra.mxu0 0.0
    %264 = vmatprep.subr.mxu0 0.0
    %265 = vmatpush2.msra.mxu0 0.0
    %266 = vmatprep.subr.mxu0 0.0
    %267 = vmatpush2.msra.mxu0 0.0
    %268 = vmatprep.subr.mxu0 0.0
    %269 = vmatpush2.msra.mxu0 0.0
    %270 = vmatprep.subr.mxu0 0.0
    %271 = vmatpush2.msra.mxu0 0.0
    %272 = vmatprep.subr.mxu0 0.0
    %273 = vmatpush2.msra.mxu0 0.0
    %274 = vmatprep.subr.mxu0 0.0
    %275 = vmatpush2.msra.mxu0 0.0
    %276 = vmatprep.subr.mxu0 0.0
    %277 = vmatpush2.msra.mxu0 0.0
    %278 = vmatprep.subr.mxu0 0.0
    %279 = vmatpush2.msra.mxu0 0.0
    %280 = vmatprep.subr.mxu0 0.0
    %281 = vmatpush2.msra.mxu0 0.0
    %282 = vmatprep.subr.mxu0 0.0
    %283 = vmatpush2.msra.mxu0 0.0
    %284 = vmatprep.subr.mxu0 0.0
    %285 = vmatpush2.msra.mxu0 0.0
    %286 = vmatprep.subr.mxu0 0.0
    %287 = vmatpush2.msra.mxu0 0.0
    %288 = vmatprep.mubr.f32.mxu0 0.0
    %289 = vmatmul.mubr.f32.gmra.mxu0 %v219
    %v290 = vpop.f32.mrf.mxu0
    %v291 = vadd.f32 0.0, %v290
    %v292 = vpop.f32.mrf.mxu0
    %293 = vmatprep.mubr.f32.mxu0 0.0
    %294 = vmatmul.mubr.f32.gmra.mxu0 %v222
    %v295 = vpop.f32.mrf.mxu0
    %v296 = vadd.f32 0.0, %v295
    %v297 = vpop.f32.mrf.mxu0
    %298 = vdwg.mxu0
    %v300 = vsel %vm195, %v187, 0
    %v303 = vsel %vm195, %v192, 0
    %305 = vmatprep.subr.mxu0 0.0
    %306 = vmatpush1.msra.mxu0 0.0
    %307 = vmatprep.subr.mxu0 0.0
    %308 = vmatpush1.msra.mxu0 0.0
    %309 = vmatprep.subr.mxu0 0.0
    %310 = vmatpush1.msra.mxu0 0.0
    %311 = vmatprep.subr.mxu0 0.0
    %312 = vmatpush1.msra.mxu0 0.0
    %313 = vmatprep.subr.mxu0 0.0
    %314 = vmatpush1.msra.mxu0 0.0
    %315 = vmatprep.subr.mxu0 0.0
    %316 = vmatpush1.msra.mxu0 0.0
    %317 = vmatprep.subr.mxu0 0.0
    %318 = vmatpush1.msra.mxu0 0.0
    %319 = vmatprep.subr.mxu0 0.0
    %320 = vmatpush1.msra.mxu0 0.0
    %321 = vmatprep.subr.mxu0 0.0
    %322 = vmatpush1.msra.mxu0 0.0
    %323 = vmatprep.subr.mxu0 0.0
    %324 = vmatpush1.msra.mxu0 0.0
    %325 = vmatprep.subr.mxu0 0.0
    %326 = vmatpush1.msra.mxu0 0.0
    %327 = vmatprep.subr.mxu0 0.0
    %328 = vmatpush1.msra.mxu0 0.0
    %329 = vmatprep.subr.mxu0 0.0
    %330 = vmatpush1.msra.mxu0 %v213
    %331 = vmatprep.subr.mxu0 0.0
    %332 = vmatpush1.msra.mxu0 %v212
    %333 = vmatprep.subr.mxu0 0.0
    %334 = vmatpush1.msra.mxu0 %v211
    %335 = vmatprep.subr.mxu0 0.0
    %336 = vmatpush1.msra.mxu0 %v210
    %337 = vmatprep.subr.mxu0 0.0
    %338 = vmatpush2.msra.mxu0 0.0
    %339 = vmatprep.subr.mxu0 0.0
    %340 = vmatpush2.msra.mxu0 0.0
    %341 = vmatprep.subr.mxu0 0.0
    %342 = vmatpush2.msra.mxu0 0.0
    %343 = vmatprep.subr.mxu0 0.0
    %344 = vmatpush2.msra.mxu0 0.0
    %345 = vmatprep.subr.mxu0 0.0
    %346 = vmatpush2.msra.mxu0 0.0
    %347 = vmatprep.subr.mxu0 0.0
    %348 = vmatpush2.msra.mxu0 0.0
    %349 = vmatprep.subr.mxu0 0.0
    %350 = vmatpush2.msra.mxu0 0.0
    %351 = vmatprep.subr.mxu0 0.0
    %352 = vmatpush2.msra.mxu0 0.0
    %353 = vmatprep.subr.mxu0 0.0
    %354 = vmatpush2.msra.mxu0 0.0
    %355 = vmatprep.subr.mxu0 0.0
    %356 = vmatpush2.msra.mxu0 0.0
    %357 = vmatprep.subr.mxu0 0.0
    %358 = vmatpush2.msra.mxu0 0.0
    %359 = vmatprep.subr.mxu0 0.0
    %360 = vmatpush2.msra.mxu0 0.0
    %361 = vmatprep.subr.mxu0 0.0
    %362 = vmatpush2.msra.mxu0 0.0
    %363 = vmatprep.subr.mxu0 0.0
    %364 = vmatpush2.msra.mxu0 0.0
    %365 = vmatprep.subr.mxu0 0.0
    %366 = vmatpush2.msra.mxu0 0.0
    %367 = vmatprep.subr.mxu0 0.0
    %368 = vmatpush2.msra.mxu0 0.0
    %369 = vmatprep.mubr.f32.mxu0 0.0
    %370 = vmatmul.mubr.f32.gmra.mxu0 %v300
    %v371 = vpop.f32.mrf.mxu0
    %v372 = vadd.f32 %v291, %v371
    %v373 = vpop.f32.mrf.mxu0
    %374 = vmatprep.mubr.f32.mxu0 0.0
    %375 = vmatmul.mubr.f32.gmra.mxu0 %v303
    %v376 = vpop.f32.mrf.mxu0
    %v377 = vadd.f32 %v296, %v376
    %v378 = vpop.f32.mrf.mxu0
    %379 = vdwg.mxu0
    %v380 = vld [vmem:[%s5] sm:$0x1]
    %v382 = vlaneseq
    %v383 = vshrl.u32 %v382, 7
    %v384 = vsub.s32 0, %v383
    %v385 = vrot.slane %v380, %v384
    %v387 = vadd.f32 %v372, %v385
    %v388 = vadd.f32 %v377, %v385
    %v389 = vmax.f32 %v387, 0.0
    %v390 = vmax.f32 %v388, 0.0
    %v391 = vld [vmem:[#allocation10] sm:$0xff]
    %v392 = vld [vmem:[#allocation10 + $0x8] sm:$0xff]
    %v393 = vld [vmem:[#allocation10 + $0x10] sm:$0xff]
    %v394 = vld [vmem:[#allocation10 + $0x18] sm:$0xff]
    %v395 = vld [vmem:[%s7] sm:$0x1]
    %v397 = vlaneseq
    %v398 = vshrl.u32 %v397, 7
    %v399 = vsub.s32 0, %v398
    %v400 = vrot.slane %v395, %v399
    %v403 = vsel %vm195, %v389, 0
    %v406 = vsel %vm195, %v390, 0
    %408 = vmatprep.subr.mxu0 0.0
    %409 = vmatpush1.msra.mxu0 0.0
    %410 = vmatprep.subr.mxu0 0.0
    %411 = vmatpush1.msra.mxu0 0.0
    %412 = vmatprep.subr.mxu0 0.0
    %413 = vmatpush1.msra.mxu0 0.0
    %414 = vmatprep.subr.mxu0 0.0
    %415 = vmatpush1.msra.mxu0 0.0
    %416 = vmatprep.subr.mxu0 0.0
    %417 = vmatpush1.msra.mxu0 0.0
    %418 = vmatprep.subr.mxu0 0.0
    %419 = vmatpush1.msra.mxu0 0.0
    %420 = vmatprep.subr.mxu0 0.0
    %421 = vmatpush1.msra.mxu0 0.0
    %422 = vmatprep.subr.mxu0 0.0
    %423 = vmatpush1.msra.mxu0 0.0
    %424 = vmatprep.subr.mxu0 0.0
    %425 = vmatpush1.msra.mxu0 0.0
    %426 = vmatprep.subr.mxu0 0.0
    %427 = vmatpush1.msra.mxu0 0.0
    %428 = vmatprep.subr.mxu0 0.0
    %429 = vmatpush1.msra.mxu0 0.0
    %430 = vmatprep.subr.mxu0 0.0
    %431 = vmatpush1.msra.mxu0 0.0
    %432 = vmatprep.subr.mxu0 0.0
    %433 = vmatpush1.msra.mxu0 %v394
    %434 = vmatprep.subr.mxu0 0.0
    %435 = vmatpush1.msra.mxu0 %v393
    %436 = vmatprep.subr.mxu0 0.0
    %437 = vmatpush1.msra.mxu0 %v392
    %438 = vmatprep.subr.mxu0 0.0
    %439 = vmatpush1.msra.mxu0 %v391
    %440 = vmatprep.subr.mxu0 0.0
    %441 = vmatpush2.msra.mxu0 0.0
    %442 = vmatprep.subr.mxu0 0.0
    %443 = vmatpush2.msra.mxu0 0.0
    %444 = vmatprep.subr.mxu0 0.0
    %445 = vmatpush2.msra.mxu0 0.0
    %446 = vmatprep.subr.mxu0 0.0
    %447 = vmatpush2.msra.mxu0 0.0
    %448 = vmatprep.subr.mxu0 0.0
    %449 = vmatpush2.msra.mxu0 0.0
    %450 = vmatprep.subr.mxu0 0.0
    %451 = vmatpush2.msra.mxu0 0.0
    %452 = vmatprep.subr.mxu0 0.0
    %453 = vmatpush2.msra.mxu0 0.0
    %454 = vmatprep.subr.mxu0 0.0
    %455 = vmatpush2.msra.mxu0 0.0
    %456 = vmatprep.subr.mxu0 0.0
    %457 = vmatpush2.msra.mxu0 0.0
    %458 = vmatprep.subr.mxu0 0.0
    %459 = vmatpush2.msra.mxu0 0.0
    %460 = vmatprep.subr.mxu0 0.0
    %461 = vmatpush2.msra.mxu0 0.0
    %462 = vmatprep.subr.mxu0 0.0
    %463 = vmatpush2.msra.mxu0 0.0
    %464 = vmatprep.subr.mxu0 0.0
    %465 = vmatpush2.msra.mxu0 0.0
    %466 = vmatprep.subr.mxu0 0.0
    %467 = vmatpush2.msra.mxu0 0.0
    %468 = vmatprep.subr.mxu0 0.0
    %469 = vmatpush2.msra.mxu0 0.0
    %470 = vmatprep.subr.mxu0 0.0
    %471 = vmatpush2.msra.mxu0 0.0
    %472 = vmatprep.mubr.f32.mxu0 0.0
    %473 = vmatmul.mubr.f32.gmra.mxu0 %v403
    %v474 = vpop.f32.mrf.mxu0
    %v475 = vadd.f32 %v400, %v474
    %v476 = vpop.f32.mrf.mxu0
    %477 = vmatprep.mubr.f32.mxu0 0.0
    %478 = vmatmul.mubr.f32.gmra.mxu0 %v406
    %v479 = vpop.f32.mrf.mxu0
    %v480 = vadd.f32 %v400, %v479
    %v481 = vpop.f32.mrf.mxu0
    %482 = vdwg.mxu0
    %483 = vst.msk [vmem:[#allocation11] sm:$0xff] %vm195, %v475
    %484 = vst.msk [vmem:[#allocation11 + $0x8] sm:$0xff] %vm195, %v480
    // Predicated region
    $region54: #{tpu_custom_call.1} parent=1 // pred_check
      _
    $region55: #{tpu_custom_call.1} parent=1 // pred_check_branch
      %486 = sbr.rel (0) target = $region57
    $region56: #{tpu_custom_call.1} parent=1 // pred_region
      %s488 = ssub.s32 256, 256
      %489 = vsyncadd [#allocation4], %s488
      %s490 = sshll.u32 [#allocation11], 4
      %s491 = int_to_ptr.vmem [resolvable:$true] %s490
      %496 = dma.vmem_to_hbm [thread:$0]  %s491, 256, %s8, [#allocation4], 128, 128, 8
    $region57: #{tpu_custom_call.1} parent=1 // pred_fallthru
      _
    // Predicated region
    $region58: #{tpu_custom_call.1} parent=1 // pred_check
      _
    $region59: #{tpu_custom_call.1} parent=1 // pred_check_branch
      %498 = sbr.rel (0) target = $region61
    $region60: #{tpu_custom_call.1} parent=1 // pred_region
      %499 = dma.done [#allocation4], 256
    $region61: #{tpu_custom_call.1} parent=1 // pred_fallthru
      _
    %500 = vsyncpa [#allocation3], 1
    %501 = vsyncpa [#allocation6], 1
    %502 = vsyncpa [#allocation9], 1
    %503 = vsyncpa [#allocation4], 1

</llo_original>
